<compile_context>
chip_gen: v5e
topology: v5e:2x2
jax: 0.10.0
libtpu: 0.0.40
codegen_flags: <defaults>
</compile_context>

<pallas_src>
import math

import jax
import jax.numpy as jnp
from jax.experimental import pallas as pl
from jax.experimental.pallas import tpu as pltpu

MXU_DTYPE = jnp.bfloat16


# ---------------------------------------------------------------------------
# helpers
# ---------------------------------------------------------------------------
def _round_up(x: int, m: int) -> int:
    return (x + m - 1) // m * m


def _pad2(a, rows, cols):
    r, c = a.shape
    if (r, c) == (rows, cols):
        return a
    return jnp.pad(a, ((0, rows - r), (0, cols - c)))


def _vmem_budget_bytes() -> int:
    """Generation-aware scoped-VMEM budget (v7x: 64 MiB phys, v5e/v6e: 128)."""
    try:
        phys = int(pltpu.get_tpu_info().vmem_capacity_bytes)
    except Exception:  # pragma: no cover - conservative fallback (v7x-sized)
        phys = 64 * 1024 * 1024
    return min(100 * 1024 * 1024, phys * 3 // 4)


def _balanced_tile(dim: int, cap: int, align: int) -> int:
    """Largest align-multiple tile <= cap that balances padding across tiles."""
    dim_a = _round_up(max(dim, 1), align)
    if dim_a <= cap:
        return dim_a
    n_tiles = math.ceil(dim_a / cap)
    return _round_up(math.ceil(dim / n_tiles), align)


def _pick_lane_tile(dim: int, cap: int) -> int:
    """Prefer 256-aligned tiles (v6e/v7x MXU) unless 128-aligned pads less."""
    best_key, best_t = None, None
    for align in (256, 128):
        t = _balanced_tile(dim, cap, align)
        key = (_round_up(dim, t), -align)  # minimize padding, prefer 256
        if best_key is None or key < best_key:
            best_key, best_t = key, t
    return best_t


# ---------------------------------------------------------------------------
# kernels
# ---------------------------------------------------------------------------
def _dense_tanh_2d_kernel(x_ref, w_ref, b_ref, o_ref):
    # Fast path: whole K in one tile -> no accumulator, no branches.
    acc = jnp.dot(x_ref[...], w_ref[...], preferred_element_type=jnp.float32)
    o_ref[...] = jnp.tanh(acc + b_ref[...])


def _dense_tanh_3d_kernel(x_ref, w_ref, b_ref, o_ref):
    # K-reduction path: accumulate directly into the resident f32 output tile.
    k = pl.program_id(2)

    @pl.when(k == 0)
    def _():
        # Fold bias into the accumulator init (no per-step broadcast/add).
        o_ref[...] = jnp.broadcast_to(b_ref[...], o_ref.shape)

    o_ref[...] += jnp.dot(
        x_ref[...], w_ref[...], preferred_element_type=jnp.float32
    )

    @pl.when(k == pl.num_programs(2) - 1)
    def _():
        o_ref[...] = jnp.tanh(o_ref[...])


# ---------------------------------------------------------------------------
# plan (one-time weight prep, hoisted out of the forward hot path)
# ---------------------------------------------------------------------------
class BottomModelPlan:
    """Pads/casts W and b once and fixes the N/K tiling for all forwards."""

    def __init__(self, w_t, b):
        d_in, d_out = w_t.shape
        assert b.shape == (1, d_out)

        budget = _vmem_budget_bytes()
        if budget >= 80 * 1024 * 1024:      # v5e / v6e (128 MiB physical VMEM)
            tm_cap, tn_cap, tk_cap = 1024, 1024, 2048
        else:                               # v7x (64 MiB physical VMEM)
            tm_cap, tn_cap, tk_cap = 512, 512, 2048

        tn = _pick_lane_tile(d_out, tn_cap)
        tk = _pick_lane_tile(d_in, tk_cap)
        n_p = _round_up(d_out, tn)
        k_p = _round_up(d_in, tk)

        # One-time HBM prep: bf16 MXU weight, f32 bias (epilogue stays f32).
        self.w_p = _pad2(jnp.asarray(w_t).astype(MXU_DTYPE), k_p, n_p)
        self.b_p = _pad2(jnp.asarray(b).astype(jnp.float32), 1, n_p)

        self.d_in, self.d_out = d_in, d_out
        self.tn, self.tk, self.n_p, self.k_p = tn, tk, n_p, k_p
        self.tm_cap = tm_cap
        self.budget = budget


def bottom_model_forward(x, plan: BottomModelPlan):
    """tanh(x @ W^T + b) with x: (B, D_in); returns f32 (B, D_out)."""
    b_rows, d_in = x.shape
    assert d_in == plan.d_in
    tn, tk, n_p, k_p = plan.tn, plan.tk, plan.n_p, plan.k_p

    # Balanced M tile (multiple of 8), as large as the budget allows so the
    # weight is re-streamed from HBM as few times as possible.
    tm = _balanced_tile(b_rows, plan.tm_cap, 8)
    m_p = _round_up(b_rows, tm)

    def tile_bytes(tm_, tn_, tk_):
        # double-buffered inputs + double-buffered f32 output tile
        return 2 * (tm_ * tk_ * 2 + tk_ * tn_ * 2 + tn_ * 4) + 2 * (tm_ * tn_ * 4)

    while tile_bytes(tm, tn, tk) > plan.budget // 2 and tm > 8:
        tm = _round_up(max(8, tm // 2), 8)
        m_p = _round_up(b_rows, tm)

    # v7x has 2 TensorCores: make sure at least one "parallel" axis has >= 2
    # blocks when there is enough work (inert on v5e/v6e's single TC).
    if m_p // tm == 1 and n_p // tn == 1 and b_rows >= 256:
        tm = _round_up(math.ceil(m_p / 2), 8)
        m_p = _round_up(b_rows, tm)

    grid_m, grid_n, grid_k = m_p // tm, n_p // tn, k_p // tk

    x_p = _pad2(x.astype(MXU_DTYPE), m_p, k_p)

    if grid_k == 1:
        out = pl.pallas_call(
            _dense_tanh_2d_kernel,
            out_shape=jax.ShapeDtypeStruct((m_p, n_p), jnp.float32),
            grid_spec=pltpu.PrefetchScalarGridSpec(
                num_scalar_prefetch=0,
                grid=(grid_m, grid_n),
                in_specs=[
                    pl.BlockSpec((tm, k_p), lambda i, j: (i, 0)),
                    pl.BlockSpec((k_p, tn), lambda i, j: (0, j)),
                    pl.BlockSpec((1, tn), lambda i, j: (0, j)),
                ],
                out_specs=pl.BlockSpec((tm, tn), lambda i, j: (i, j)),
            ),
            compiler_params=pltpu.CompilerParams(
                dimension_semantics=("parallel", "parallel"),
                vmem_limit_bytes=plan.budget,
            ),
        )(x_p, plan.w_p, plan.b_p)
    else:
        out = pl.pallas_call(
            _dense_tanh_3d_kernel,
            out_shape=jax.ShapeDtypeStruct((m_p, n_p), jnp.float32),
            grid_spec=pltpu.PrefetchScalarGridSpec(
                num_scalar_prefetch=0,
                grid=(grid_m, grid_n, grid_k),
                in_specs=[
                    pl.BlockSpec((tm, tk), lambda i, j, k: (i, k)),
                    pl.BlockSpec((tk, tn), lambda i, j, k: (k, j)),
                    pl.BlockSpec((1, tn), lambda i, j, k: (0, j)),
                ],
                out_specs=pl.BlockSpec((tm, tn), lambda i, j, k: (i, j)),
            ),
            compiler_params=pltpu.CompilerParams(
                dimension_semantics=("parallel", "parallel", "arbitrary"),
                vmem_limit_bytes=plan.budget,
            ),
        )(x_p, plan.w_p, plan.b_p)

    return out[:b_rows, : plan.d_out]


# ---------------------------------------------------------------------------
# parameter init matching nn.Linear(input, input) + xavier_uniform_ weight
# ---------------------------------------------------------------------------
def init_params(key, input_size):
    k_w, k_b = jax.random.split(key)
    fan_in = fan_out = input_size
    a = math.sqrt(6.0 / (fan_in + fan_out))
    w = jax.random.uniform(k_w, (input_size, input_size), jnp.float32, -a, a)
    bound = 1.0 / math.sqrt(fan_in)
    b = jax.random.uniform(k_b, (1, input_size), jnp.float32, -bound, bound)
    return w.T, b  # (in, out) so the kernel computes x @ W^T directly


if __name__ == "__main__":
    key = jax.random.PRNGKey(0)
    k_x, k_p, k_x2, k_p2, k_x3, k_p3 = jax.random.split(key, 6)

    # 1) Small shape matching the module spec (batch=8, input_size=32).
    batch, input_size = 8, 32
    x = jax.random.normal(k_x, (batch, input_size), dtype=jnp.float32)
    w_t, b = init_params(k_p, input_size)
    plan = BottomModelPlan(w_t, b)                       # weight prep hoisted
    out = jax.block_until_ready(bottom_model_forward(x, plan))
    ref = jnp.tanh(x @ w_t + b)
    assert out.shape == (batch, input_size) and out.dtype == jnp.float32
    assert jnp.allclose(out, ref, atol=5e-2), float(jnp.max(jnp.abs(out - ref)))

    # 2) Non-aligned size: exercises padding + output slicing (2-D fast path).
    batch2, input_size2 = 200, 384
    x2 = jax.random.normal(k_x2, (batch2, input_size2), dtype=jnp.float32)
    w_t2, b2 = init_params(k_p2, input_size2)
    plan2 = BottomModelPlan(w_t2, b2)
    out2 = jax.block_until_ready(bottom_model_forward(x2, plan2))
    ref2 = jnp.tanh(x2 @ w_t2 + b2)
    assert out2.shape == (batch2, input_size2)
    assert jnp.allclose(out2, ref2, atol=5e-2), float(jnp.max(jnp.abs(out2 - ref2)))

    # 3) Large K: exercises the tiled K-reduction (3-D accumulate-into-output).
    batch3, input_size3 = 64, 2560
    x3 = jax.random.normal(k_x3, (batch3, input_size3), dtype=jnp.float32)
    w_t3, b3 = init_params(k_p3, input_size3)
    plan3 = BottomModelPlan(w_t3, b3)
    out3 = jax.block_until_ready(bottom_model_forward(x3, plan3))
    ref3 = jnp.tanh(x3 @ w_t3 + b3)
    assert out3.shape == (batch3, input_size3)
    assert jnp.allclose(out3, ref3, atol=5e-2), float(jnp.max(jnp.abs(out3 - ref3)))

    print("KERNEL_OK")
</pallas_src>

<mosaic_0001>
module attributes {stable_mosaic.version = 11 : i64} {
  func.func @_dense_tanh_2d_kernel(%arg0: i32, %arg1: i32, %arg2: memref<8x128xbf16, #tpu.memory_space<vmem>>, %arg3: memref<128x128xbf16, #tpu.memory_space<vmem>>, %arg4: memref<1x128xf32, #tpu.memory_space<vmem>>, %arg5: memref<8x128xf32, #tpu.memory_space<vmem>>) attributes {dimension_semantics = [#tpu.dimension_semantics<parallel>, #tpu.dimension_semantics<parallel>], iteration_bounds = array<i64: 1, 1>, scalar_prefetch = 0 : i64, scratch_operands = 0 : i64, tpu.core_type = #tpu.core_type<tc>, window_params = [{transform_indices = @transform_0, window_bounds = array<i64: 8, 128>}, {transform_indices = @transform_1, window_bounds = array<i64: 128, 128>}, {transform_indices = @transform_2, window_bounds = array<i64: 1, 128>}, {transform_indices = @transform_3, window_bounds = array<i64: 8, 128>}]} {
    %c0 = arith.constant 0 : index
    %c0_0 = arith.constant 0 : index
    %0 = vector.load %arg2[%c0, %c0_0] : memref<8x128xbf16, #tpu.memory_space<vmem>>, vector<8x128xbf16>
    %c0_1 = arith.constant 0 : index
    %c0_2 = arith.constant 0 : index
    %1 = vector.load %arg3[%c0_1, %c0_2] : memref<128x128xbf16, #tpu.memory_space<vmem>>, vector<128x128xbf16>
    %cst = arith.constant dense<0.000000e+00> : vector<8x128xf32>
    %2 = tpu.matmul %0, %1, %cst {dimension_numbers = #tpu.dot_dimension_numbers<[1], [0], [0], [1], [0, 0, 1, 1], [], []>} : vector<8x128xbf16>, vector<128x128xbf16>, vector<8x128xf32> -> vector<8x128xf32>
    %c0_3 = arith.constant 0 : index
    %c0_4 = arith.constant 0 : index
    %3 = vector.load %arg4[%c0_3, %c0_4] : memref<1x128xf32, #tpu.memory_space<vmem>>, vector<1x128xf32>
    %4 = vector.broadcast %3 : vector<1x128xf32> to vector<8x128xf32>
    %5 = arith.addf %2, %4 : vector<8x128xf32>
    %6 = math.tanh %5 : vector<8x128xf32>
    %c0_5 = arith.constant 0 : index
    %c0_6 = arith.constant 0 : index
    %7 = vector.load %arg5[%c0_5, %c0_6] : memref<8x128xf32, #tpu.memory_space<vmem>>, vector<8x128xf32>
    tpu.vector_store %arg5[%c0_5, %c0_6], %6 {strides = array<i32>} : memref<8x128xf32, #tpu.memory_space<vmem>>, vector<8x128xf32>,
    return
  }
  func.func @transform_0(%arg0: i32, %arg1: i32) -> (i32, i32) {
    %c0_i32 = arith.constant 0 : i32
    %c0_i32_0 = arith.constant 0 : i32
    return %arg0, %c0_i32 : i32, i32
  }
  func.func @transform_1(%arg0: i32, %arg1: i32) -> (i32, i32) {
    %c0_i32 = arith.constant 0 : i32
    %c0_i32_0 = arith.constant 0 : i32
    return %c0_i32, %arg1 : i32, i32
  }
  func.func @transform_2(%arg0: i32, %arg1: i32) -> (i32, i32) {
    %c0_i32 = arith.constant 0 : i32
    %c0_i32_0 = arith.constant 0 : i32
    return %c0_i32, %arg1 : i32, i32
  }
  func.func @transform_3(%arg0: i32, %arg1: i32) -> (i32, i32) {
    %c0_i32 = arith.constant 0 : i32
    return %arg0, %arg1 : i32, i32
  }
}

</mosaic_0001>

<llo_original>
// kernel: tpu_custom_call.1
$region0: #{tpu_custom_call.1}
  #allocation0 [shape = 'u32[]', space=smem, size = 0x4, offset = 0x4, fixed_abs, tag = 'smem constant byte address 0x4 - core index']
  #allocation1 [shape = 'u32[72,128]{1,0:T(1,128)}', space=vmem, size = 0x9000, scoped, tag = 'internal scratch']
  %s0 = inlined_call_operand.hbm [shape: bf16[8,128], index: 0, kind: input, shape index: {}]
  %s1 = inlined_call_operand.hbm [shape: bf16[128,128], index: 1, kind: input, shape index: {}]
  %s2 = inlined_call_operand.vmem [shape: f32[1,128], index: 2, kind: input, shape index: {}]
  %s3 = inlined_call_operand.hbm [shape: f32[8,128], index: 3, kind: output, shape index: {}]
  %s4 = sld [smem:[#allocation0]]
  $region30: #{tpu_custom_call.1} parent=0
    _
  %s6 = ssub.s32 1, %s4
  %s7 = scalar_select 0, %s6, %s4
  $region1: #{tpu_custom_call.1} parent=0
    #allocation2 [shape = 'u8[2048]{0}', space=vmem, size = 0x800, scoped, tag = 'input window, operand 0, single buffered']
    #allocation3 [shape = 's32[1]{0}', space=sflag, size = 0x4, scoped, tag = 'scoped memory for tpu_custom_call.1']
    #allocation4 [shape = 's32[1]{0}', space=sflag, size = 0x4, scoped, tag = 'scoped memory for tpu_custom_call.1']
    #allocation5 [shape = 'u8[32768]{0}', space=vmem, size = 0x8000, scoped, tag = 'input window, operand 1, single buffered']
    #allocation6 [shape = 's32[1]{0}', space=sflag, size = 0x4, scoped, tag = 'scoped memory for tpu_custom_call.1']
    #allocation7 [shape = 'u8[4096]{0}', space=vmem, size = 0x1000, scoped, tag = 'output window, operand 0, single buffered']
    %8 = vsyncpa [#allocation3], 0
    %9 = vsyncpa [#allocation6], 0
    %10 = vsyncpa [#allocation4], 0
    // Predicated region
    $region2: #{tpu_custom_call.1} parent=1 // pred_check
      _
    $region3: #{tpu_custom_call.1} parent=1 // pred_check_branch
      %12 = sbr.rel (0) target = $region5
    $region4: #{tpu_custom_call.1} parent=1 // pred_region
      %14 = vsyncadd [#allocation3], 0
      %s16 = sshll.u32 %s0, 4
      %s17 = int_to_ptr.hbm [resolvable:$true] %s16
      %s18 = sshll.u32 [#allocation2], 4
      %s19 = int_to_ptr.vmem [resolvable:$true] %s18
      %21 = dma.hbm_to_vmem [thread:$0]  %s17, 64, %s19, [#allocation3]
    $region5: #{tpu_custom_call.1} parent=1 // pred_fallthru
      _
    // Predicated region
    $region6: #{tpu_custom_call.1} parent=1 // pred_check
      _
    $region7: #{tpu_custom_call.1} parent=1 // pred_check_branch
      %23 = sbr.rel (0) target = $region9
    $region8: #{tpu_custom_call.1} parent=1 // pred_region
      %25 = vsyncadd [#allocation6], 0
      %s26 = sshll.u32 %s1, 4
      %s27 = int_to_ptr.hbm [resolvable:$true] %s26
      %s28 = sshll.u32 [#allocation5], 4
      %s29 = int_to_ptr.vmem [resolvable:$true] %s28
      %34 = dma.hbm_to_vmem [thread:$0]  %s27, 1024, %s29, [#allocation6], 64, 64, 4
    $region9: #{tpu_custom_call.1} parent=1 // pred_fallthru
      _
    // Predicated region
    $region10: #{tpu_custom_call.1} parent=1 // pred_check
      _
    $region11: #{tpu_custom_call.1} parent=1 // pred_check_branch
      %36 = sbr.rel (0) target = $region13
    $region12: #{tpu_custom_call.1} parent=1 // pred_region
      _
    $region13: #{tpu_custom_call.1} parent=1 // pred_fallthru
      _
    // Predicated region
    $region14: #{tpu_custom_call.1} parent=1 // pred_check
      _
    $region15: #{tpu_custom_call.1} parent=1 // pred_check_branch
      %38 = sbr.rel (0) target = $region17
    $region16: #{tpu_custom_call.1} parent=1 // pred_region
      %40 = dma.done [#allocation3], 64
    $region17: #{tpu_custom_call.1} parent=1 // pred_fallthru
      _
    // Predicated region
    $region18: #{tpu_custom_call.1} parent=1 // pred_check
      _
    $region19: #{tpu_custom_call.1} parent=1 // pred_check_branch
      %42 = sbr.rel (0) target = $region21
    $region20: #{tpu_custom_call.1} parent=1 // pred_region
      %44 = dma.done [#allocation6], 1024
    $region21: #{tpu_custom_call.1} parent=1 // pred_fallthru
      _
    %v45 = vld [vmem:[#allocation2] sm:$0xf]
    %v46 = vld [vmem:[#allocation5] sm:$0xf]
    %v47 = vld [vmem:[#allocation5 + $0x4] sm:$0xf]
    %v48 = vld [vmem:[#allocation5 + $0x8] sm:$0xf]
    %v49 = vld [vmem:[#allocation5 + $0xc] sm:$0xf]
    %v50 = vld [vmem:[#allocation5 + $0x10] sm:$0xf]
    %v51 = vld [vmem:[#allocation5 + $0x14] sm:$0xf]
    %v52 = vld [vmem:[#allocation5 + $0x18] sm:$0xf]
    %v53 = vld [vmem:[#allocation5 + $0x1c] sm:$0xf]
    %v54 = vld [vmem:[#allocation5 + $0x20] sm:$0xf]
    %v55 = vld [vmem:[#allocation5 + $0x24] sm:$0xf]
    %v56 = vld [vmem:[#allocation5 + $0x28] sm:$0xf]
    %v57 = vld [vmem:[#allocation5 + $0x2c] sm:$0xf]
    %v58 = vld [vmem:[#allocation5 + $0x30] sm:$0xf]
    %v59 = vld [vmem:[#allocation5 + $0x34] sm:$0xf]
    %v60 = vld [vmem:[#allocation5 + $0x38] sm:$0xf]
    %v61 = vld [vmem:[#allocation5 + $0x3c] sm:$0xf]
    %v62 = vld [vmem:[%s2] sm:$0x1]
    %v64 = vperm.slane %v62, 0
    %v82 = vunpack.c.l.b16 %v46
    %v83 = vunpack.c.l.b16 %v47
    %v84 = vunpack.c.l.b16 %v48
    %v85 = vunpack.c.l.b16 %v49
    %v86 = vunpack.c.l.b16 %v50
    %v87 = vunpack.c.l.b16 %v51
    %v88 = vunpack.c.l.b16 %v52
    %v89 = vunpack.c.l.b16 %v53
    %v90 = vunpack.c.l.b16 %v54
    %v91 = vunpack.c.l.b16 %v55
    %v92 = vunpack.c.l.b16 %v56
    %v93 = vunpack.c.l.b16 %v57
    %v94 = vunpack.c.l.b16 %v58
    %v95 = vunpack.c.l.b16 %v59
    %v96 = vunpack.c.l.b16 %v60
    %v97 = vunpack.c.l.b16 %v61
    %v98 = vpack.c.b16 %v83, %v82
    %v99 = vpack.c.b16 %v85, %v84
    %v100 = vpack.c.b16 %v87, %v86
    %v101 = vpack.c.b16 %v89, %v88
    %v102 = vpack.c.b16 %v91, %v90
    %v103 = vpack.c.b16 %v93, %v92
    %v104 = vpack.c.b16 %v95, %v94
    %v105 = vpack.c.b16 %v97, %v96
    %114 = vmatpush.bf16.msra.mxu0 %v105
    %115 = vmatpush.bf16.msra.mxu0 %v104
    %116 = vmatpush.bf16.msra.mxu0 %v103
    %117 = vmatpush.bf16.msra.mxu0 %v102
    %118 = vmatpush.bf16.msra.mxu0 %v101
    %119 = vmatpush.bf16.msra.mxu0 %v100
    %120 = vmatpush.bf16.msra.mxu0 %v99
    %121 = vmatpush.bf16.msra.mxu0 %v98
    %122 = vmatmul.bf16.gmra.mxu0 %v45
    %v123 = vpop.f32.mrf.mxu0
    %v124 = vadd.f32 %v64, %v123
    %v125 = vpop.f32.mrf.mxu0
    %126 = vdwg.mxu0
    %v127 = vtanh.pop %v124
    %128 = vst [vmem:[#allocation7] sm:$0xff] %v127
    // Predicated region
    $region22: #{tpu_custom_call.1} parent=1 // pred_check
      _
    $region23: #{tpu_custom_call.1} parent=1 // pred_check_branch
      %130 = sbr.rel (0) target = $region25
    $region24: #{tpu_custom_call.1} parent=1 // pred_region
      %132 = vsyncadd [#allocation4], 0
      %s134 = sshll.u32 [#allocation7], 4
      %s135 = int_to_ptr.vmem [resolvable:$true] %s134
      %s136 = sshll.u32 %s3, 4
      %s137 = int_to_ptr.hbm [resolvable:$true] %s136
      %139 = dma.vmem_to_hbm [thread:$0]  %s135, 128, %s137, [#allocation4]
    $region25: #{tpu_custom_call.1} parent=1 // pred_fallthru
      _
    // Predicated region
    $region26: #{tpu_custom_call.1} parent=1 // pred_check
      _
    $region27: #{tpu_custom_call.1} parent=1 // pred_check_branch
      %141 = sbr.rel (0) target = $region29
    $region28: #{tpu_custom_call.1} parent=1 // pred_region
      %143 = dma.done [#allocation4], 128
    $region29: #{tpu_custom_call.1} parent=1 // pred_fallthru
      _
    %144 = vsyncpa [#allocation3], 1
    %145 = vsyncpa [#allocation6], 1
    %146 = vsyncpa [#allocation4], 1

</llo_original>
